<compile_context>
chip_gen: v7x
topology: tpu7x:2x2x1
jax: 0.10.0
libtpu: 0.0.40
codegen_flags: <defaults>
</compile_context>

<pallas_src>
import jax
import jax.numpy as jnp
from jax.experimental import pallas as pl
from jax.experimental.pallas import tpu as pltpu

MP = 128          # lane-dense width used for the padded weight/hidden tiles
MAX_TB = 4096     # cap on batch-tile rows (keeps 2x-buffered tiles << scoped VMEM)
MIN_TB = 128


def _drm_kernel(x_ref, w1_ref, b1_ref, w2_ref, b2_ref, w7h_ref, w7x_ref, b7_ref,
                o_ref):
    x = x_ref[...]                                                  # (tb, m) f32

    # h = relu(linear1(x)) : (tb, m) @ (m, MP) -> (tb, MP).
    # Columns >= m of W1/b1 are zero, so h[:, m:] == 0 exactly.
    h = jnp.dot(x, w1_ref[...], preferred_element_type=jnp.float32) + b1_ref[...]
    h = jnp.maximum(h, 0.0)

    # h = relu(linear2(h)) : (tb, MP) @ (MP, MP) -> (tb, MP); cols >= m stay 0.
    h = jnp.dot(h, w2_ref[...], preferred_element_type=jnp.float32) + b2_ref[...]
    h = jnp.maximum(h, 0.0)

    # out = relu(linear7(x + h)) computed as two lane reductions (VPU + XLU)
    # so x never has to be widened to MP lanes:
    #   w7 . (x + h) = sum(h * w7_padded) + sum(x * w7)
    s = (jnp.sum(h * w7h_ref[...], axis=-1, keepdims=True)
         + jnp.sum(x * w7x_ref[...], axis=-1, keepdims=True)
         + b7_ref[0, 0])                                            # (tb, 1)

    o_ref[...] = jnp.maximum(s, 0.0)                                # narrow store


def prepare_params(w1, b1, w2, b2, w7, b7):
    """One-time padding/packing of parameters (hoisted out of the forward)."""
    m = w1.shape[0]
    w1p = jnp.pad(w1, ((0, 0), (0, MP - m)))                 # (m, MP)
    b1p = jnp.pad(b1.reshape(1, m), ((0, 0), (0, MP - m)))   # (1, MP)
    w2p = jnp.pad(w2, ((0, MP - m), (0, MP - m)))            # (MP, MP)
    b2p = jnp.pad(b2.reshape(1, m), ((0, 0), (0, MP - m)))   # (1, MP)
    w7x = w7.reshape(1, m)                                   # (1, m)  for the x term
    w7h = jnp.pad(w7x, ((0, 0), (0, MP - m)))                # (1, MP) for the h term
    b7p = b7.reshape(1, 1)                                   # SMEM scalar
    return (w1p, b1p, w2p, b2p, w7h, w7x, b7p)


def _pick_tile(batch):
    # Target >= 4-8 pipelined grid steps; tiles of MIN_TB..MAX_TB rows.
    tb = pl.next_power_of_2(max(8, batch // 8))
    return int(max(MIN_TB, min(MAX_TB, tb)))


@jax.jit
def deep_ritz_forward(x, prepped):
    """x: (B, m) f32, prepped: output of prepare_params -> (B, 1) f32."""
    w1p, b1p, w2p, b2p, w7h, w7x, b7p = prepped
    B, m = x.shape
    tb = _pick_tile(B)
    bp = pl.cdiv(B, tb) * tb

    # Pad batch rows only (feature width stays at m -> no lane-pad traffic).
    xb = jnp.pad(x, ((0, bp - B), (0, 0))) if bp != B else x

    out = pl.pallas_call(
        _drm_kernel,
        out_shape=jax.ShapeDtypeStruct((bp, 1), jnp.float32),
        grid=(bp // tb,),
        in_specs=[
            pl.BlockSpec((tb, m), lambda i: (i, 0)),            # x tile (pipelined)
            pl.BlockSpec((m, MP), lambda i: (0, 0)),            # W1 (VMEM-resident)
            pl.BlockSpec((1, MP), lambda i: (0, 0)),            # b1
            pl.BlockSpec((MP, MP), lambda i: (0, 0)),           # W2 (VMEM-resident)
            pl.BlockSpec((1, MP), lambda i: (0, 0)),            # b2
            pl.BlockSpec((1, MP), lambda i: (0, 0)),            # w7 padded row
            pl.BlockSpec((1, m), lambda i: (0, 0)),             # w7 narrow row
            pl.BlockSpec(memory_space=pltpu.MemorySpace.SMEM),  # b7 scalar in SMEM
        ],
        out_specs=pl.BlockSpec((tb, 1), lambda i: (i, 0)),      # narrow (tb,1) block
        compiler_params=pltpu.CompilerParams(
            dimension_semantics=("parallel",),
        ),
    )(xb, w1p, b1p, w2p, b2p, w7h, w7x, b7p)

    return out[:B]


def init_params(key, m):
    """Deterministic init matching the PyTorch module: weights ~ N(0, 0.1), bias = 0."""
    k1, k2, k7 = jax.random.split(key, 3)
    w1 = 0.1 * jax.random.normal(k1, (m, m), dtype=jnp.float32)
    w2 = 0.1 * jax.random.normal(k2, (m, m), dtype=jnp.float32)
    w7 = 0.1 * jax.random.normal(k7, (m, 1), dtype=jnp.float32)
    b1 = jnp.zeros((1, m), dtype=jnp.float32)
    b2 = jnp.zeros((1, m), dtype=jnp.float32)
    b7 = jnp.zeros((1, 1), dtype=jnp.float32)
    return w1, b1, w2, b2, w7, b7


def reference_forward(x, w1, b1, w2, b2, w7, b7):
    dot = lambda a, b: jnp.dot(a, b, precision=jax.lax.Precision.HIGHEST)
    h = jax.nn.relu(dot(x, w1) + b1)
    h = jax.nn.relu(dot(h, w2) + b2)
    y = x + h
    return jax.nn.relu(dot(y, w7) + b7)


if __name__ == "__main__":
    m = 10
    batch = 500   # non-multiple of the batch tile on purpose: exercises padding

    key = jax.random.PRNGKey(0)
    kx, kp = jax.random.split(key)
    x = jax.random.normal(kx, (batch, m), dtype=jnp.float32)
    raw_params = init_params(kp, m)

    # One-time parameter prep (outside the per-call jitted forward).
    prepped = prepare_params(*raw_params)

    out = jax.block_until_ready(deep_ritz_forward(x, prepped))

    ref = reference_forward(x, *raw_params)
    assert out.shape == (batch, 1)
    assert jnp.allclose(out, ref, atol=1e-4, rtol=1e-4), "mismatch vs reference"

    print("KERNEL_OK")
</pallas_src>

<mosaic_0001>
module attributes {stable_mosaic.version = 11 : i64} {
  func.func @_drm_kernel(%arg0: i32, %arg1: memref<128x10xf32, #tpu.memory_space<vmem>>, %arg2: memref<10x128xf32, #tpu.memory_space<vmem>>, %arg3: memref<1x128xf32, #tpu.memory_space<vmem>>, %arg4: memref<128x128xf32, #tpu.memory_space<vmem>>, %arg5: memref<1x128xf32, #tpu.memory_space<vmem>>, %arg6: memref<1x128xf32, #tpu.memory_space<vmem>>, %arg7: memref<1x10xf32, #tpu.memory_space<vmem>>, %arg8: memref<1x1xf32, #tpu.memory_space<smem>>, %arg9: memref<128x1xf32, #tpu.memory_space<vmem>>) attributes {dimension_semantics = [#tpu.dimension_semantics<parallel>], iteration_bounds = array<i64: 4>, scalar_prefetch = 0 : i64, scratch_operands = 0 : i64, tpu.core_type = #tpu.core_type<tc>, window_params = [{transform_indices = @transform_0, window_bounds = array<i64: 128, 10>}, {pipeline_mode = #tpu.pipeline_mode<synchronous>, transform_indices = @transform_1, window_bounds = array<i64: 10, 128>}, {pipeline_mode = #tpu.pipeline_mode<synchronous>, transform_indices = @transform_2, window_bounds = array<i64: 1, 128>}, {pipeline_mode = #tpu.pipeline_mode<synchronous>, transform_indices = @transform_3, window_bounds = array<i64: 128, 128>}, {pipeline_mode = #tpu.pipeline_mode<synchronous>, transform_indices = @transform_4, window_bounds = array<i64: 1, 128>}, {pipeline_mode = #tpu.pipeline_mode<synchronous>, transform_indices = @transform_5, window_bounds = array<i64: 1, 128>}, {pipeline_mode = #tpu.pipeline_mode<synchronous>, transform_indices = @transform_6, window_bounds = array<i64: 1, 10>}, {transform_indices = @transform_7, window_bounds = array<i64: 1, 1>}, {transform_indices = @transform_8, window_bounds = array<i64: 128, 1>}]} {
    %c0 = arith.constant 0 : index
    %c0_0 = arith.constant 0 : index
    %0 = vector.load %arg1[%c0, %c0_0] : memref<128x10xf32, #tpu.memory_space<vmem>>, vector<128x10xf32>
    %c0_1 = arith.constant 0 : index
    %c0_2 = arith.constant 0 : index
    %1 = vector.load %arg2[%c0_1, %c0_2] : memref<10x128xf32, #tpu.memory_space<vmem>>, vector<10x128xf32>
    %cst = arith.constant dense<0.000000e+00> : vector<128x128xf32>
    %2 = tpu.matmul %0, %1, %cst {dimension_numbers = #tpu.dot_dimension_numbers<[1], [0], [0], [1], [0, 0, 1, 1], [], []>} : vector<128x10xf32>, vector<10x128xf32>, vector<128x128xf32> -> vector<128x128xf32>
    %c0_3 = arith.constant 0 : index
    %c0_4 = arith.constant 0 : index
    %3 = vector.load %arg3[%c0_3, %c0_4] : memref<1x128xf32, #tpu.memory_space<vmem>>, vector<1x128xf32>
    %4 = vector.broadcast %3 : vector<1x128xf32> to vector<128x128xf32>
    %5 = arith.addf %2, %4 : vector<128x128xf32>
    %cst_5 = arith.constant 0.000000e+00 : f32
    %6 = vector.broadcast %cst_5 : f32 to vector<128x128xf32>
    %7 = arith.maximumf %5, %6 : vector<128x128xf32>
    %c0_6 = arith.constant 0 : index
    %c0_7 = arith.constant 0 : index
    %8 = vector.load %arg4[%c0_6, %c0_7] : memref<128x128xf32, #tpu.memory_space<vmem>>, vector<128x128xf32>
    %cst_8 = arith.constant dense<0.000000e+00> : vector<128x128xf32>
    %9 = tpu.matmul %7, %8, %cst_8 {dimension_numbers = #tpu.dot_dimension_numbers<[1], [0], [0], [1], [0, 0, 1, 1], [], []>} : vector<128x128xf32>, vector<128x128xf32>, vector<128x128xf32> -> vector<128x128xf32>
    %c0_9 = arith.constant 0 : index
    %c0_10 = arith.constant 0 : index
    %10 = vector.load %arg5[%c0_9, %c0_10] : memref<1x128xf32, #tpu.memory_space<vmem>>, vector<1x128xf32>
    %11 = vector.broadcast %10 : vector<1x128xf32> to vector<128x128xf32>
    %12 = arith.addf %9, %11 : vector<128x128xf32>
    %cst_11 = arith.constant 0.000000e+00 : f32
    %13 = vector.broadcast %cst_11 : f32 to vector<128x128xf32>
    %14 = arith.maximumf %12, %13 : vector<128x128xf32>
    %c0_12 = arith.constant 0 : index
    %c0_13 = arith.constant 0 : index
    %15 = vector.load %arg6[%c0_12, %c0_13] : memref<1x128xf32, #tpu.memory_space<vmem>>, vector<1x128xf32>
    %16 = vector.broadcast %15 : vector<1x128xf32> to vector<128x128xf32>
    %17 = arith.mulf %14, %16 : vector<128x128xf32>
    %cst_14 = arith.constant dense<0.000000e+00> : vector<128xf32>
    %18 = vector.multi_reduction <add>, %17, %cst_14 [1] : vector<128x128xf32> to vector<128xf32>
    %19 = vector.shape_cast %18 : vector<128xf32> to vector<128x1xf32>
    %c0_15 = arith.constant 0 : index
    %c0_16 = arith.constant 0 : index
    %20 = vector.load %arg7[%c0_15, %c0_16] : memref<1x10xf32, #tpu.memory_space<vmem>>, vector<1x10xf32>
    %21 = vector.broadcast %20 : vector<1x10xf32> to vector<128x10xf32>
    %22 = arith.mulf %0, %21 : vector<128x10xf32>
    %cst_17 = arith.constant dense<0.000000e+00> : vector<128xf32>
    %23 = vector.multi_reduction <add>, %22, %cst_17 [1] : vector<128x10xf32> to vector<128xf32>
    %24 = vector.shape_cast %23 : vector<128xf32> to vector<128x1xf32>
    %25 = arith.addf %19, %24 : vector<128x1xf32>
    %c0_18 = arith.constant 0 : index
    %c0_19 = arith.constant 0 : index
    %26 = memref.load %arg8[%c0_18, %c0_19] : memref<1x1xf32, #tpu.memory_space<smem>>
    %27 = vector.broadcast %26 : f32 to vector<128x1xf32>
    %28 = arith.addf %25, %27 : vector<128x1xf32>
    %cst_20 = arith.constant 0.000000e+00 : f32
    %29 = vector.broadcast %cst_20 : f32 to vector<128x1xf32>
    %30 = arith.maximumf %28, %29 : vector<128x1xf32>
    %c0_21 = arith.constant 0 : index
    %c0_22 = arith.constant 0 : index
    %31 = vector.load %arg9[%c0_21, %c0_22] : memref<128x1xf32, #tpu.memory_space<vmem>>, vector<128x1xf32>
    tpu.vector_store %arg9[%c0_21, %c0_22], %30 {strides = array<i32>} : memref<128x1xf32, #tpu.memory_space<vmem>>, vector<128x1xf32>,
    return
  }
  func.func @transform_0(%arg0: i32) -> (i32, i32) {
    %c0_i32 = arith.constant 0 : i32
    %c0_i32_0 = arith.constant 0 : i32
    return %arg0, %c0_i32 : i32, i32
  }
  func.func @transform_1(%arg0: i32) -> (i32, i32) {
    %c0_i32 = arith.constant 0 : i32
    %c0_i32_0 = arith.constant 0 : i32
    %c0_i32_1 = arith.constant 0 : i32
    return %c0_i32, %c0_i32_0 : i32, i32
  }
  func.func @transform_2(%arg0: i32) -> (i32, i32) {
    %c0_i32 = arith.constant 0 : i32
    %c0_i32_0 = arith.constant 0 : i32
    %c0_i32_1 = arith.constant 0 : i32
    return %c0_i32, %c0_i32_0 : i32, i32
  }
  func.func @transform_3(%arg0: i32) -> (i32, i32) {
    %c0_i32 = arith.constant 0 : i32
    %c0_i32_0 = arith.constant 0 : i32
    %c0_i32_1 = arith.constant 0 : i32
    return %c0_i32, %c0_i32_0 : i32, i32
  }
  func.func @transform_4(%arg0: i32) -> (i32, i32) {
    %c0_i32 = arith.constant 0 : i32
    %c0_i32_0 = arith.constant 0 : i32
    %c0_i32_1 = arith.constant 0 : i32
    return %c0_i32, %c0_i32_0 : i32, i32
  }
  func.func @transform_5(%arg0: i32) -> (i32, i32) {
    %c0_i32 = arith.constant 0 : i32
    %c0_i32_0 = arith.constant 0 : i32
    %c0_i32_1 = arith.constant 0 : i32
    return %c0_i32, %c0_i32_0 : i32, i32
  }
  func.func @transform_6(%arg0: i32) -> (i32, i32) {
    %c0_i32 = arith.constant 0 : i32
    %c0_i32_0 = arith.constant 0 : i32
    %c0_i32_1 = arith.constant 0 : i32
    return %c0_i32, %c0_i32_0 : i32, i32
  }
  func.func @transform_7(%arg0: i32) -> (i32, i32) {
    %c0_i32 = arith.constant 0 : i32
    %c0_i32_0 = arith.constant 0 : i32
    %c0_i32_1 = arith.constant 0 : i32
    return %c0_i32, %c0_i32_0 : i32, i32
  }
  func.func @transform_8(%arg0: i32) -> (i32, i32) {
    %c0_i32 = arith.constant 0 : i32
    %c0_i32_0 = arith.constant 0 : i32
    return %arg0, %c0_i32 : i32, i32
  }
}

</mosaic_0001>

<llo_original>
// kernel: deep_ritz_forward.1
$region0: #{deep_ritz_forward.1}
  #allocation0 [shape = 'u32[]', space=smem, size = 0x4, offset = 0x4, fixed_abs, tag = 'smem constant byte address 0x4 - core index']
  #allocation1 [shape = 'u32[144,128]{1,0:T(1,128)}', space=vmem, size = 0x12000, scoped, tag = 'internal scratch']
  #allocation2 [shape = 'f32[1,1]{1,0:T(1,128)S(6)}', space=smem, size = 0x200, scoped, tag = 'scoped memory for deep_ritz_forward.1']
  %s0 = inlined_call_operand.vmem [shape: f32[512,10], index: 0, kind: input, shape index: {}]
  %s1 = inlined_call_operand.vmem [shape: f32[10,128], index: 1, kind: input, shape index: {}]
  %s2 = inlined_call_operand.vmem [shape: f32[1,128], index: 2, kind: input, shape index: {}]
  %s3 = inlined_call_operand.vmem [shape: f32[128,128], index: 3, kind: input, shape index: {}]
  %s4 = inlined_call_operand.vmem [shape: f32[1,128], index: 4, kind: input, shape index: {}]
  %s5 = inlined_call_operand.vmem [shape: f32[1,128], index: 5, kind: input, shape index: {}]
  %s6 = inlined_call_operand.vmem [shape: f32[1,10], index: 6, kind: input, shape index: {}]
  %s7 = inlined_call_operand.<no memory space> [shape: f32[1,1], index: 7, kind: input, shape index: {}]
  %s8 = inlined_call_operand.vmem [shape: f32[512,1], index: 8, kind: output, shape index: {}]
  %s9 = sld [smem:[#allocation0]]
  $region65: #{deep_ritz_forward.1} parent=0
    _
  %s11 = ssub.s32 1, %s9
  %s12 = scalar_select 0, %s11, %s9
  %13 = sst [smem:[#allocation2]] %s7
  loop: start=0, step=1, limit=6
  $region2: #{deep_ritz_forward.1} parent=0 // loop_pre_header
    _
  $region3: #{deep_ritz_forward.1} parent=0 // loop_header
    %s15 = sphi 0, %s19
    %p16 = scmp.ge.s32.totalorder %s15, 6
    %s25 = sphi 0, %s27
    %s28 = sphi 0, %s25
    %s29 = sphi 0, %s28
    %s45 = sphi 0, %s29
    %s49 = sphi 0, %s49
    %s51 = sphi 0, %s49
    %s52 = sphi 0, %s51
    %s66 = sphi 0, %s52
    %s70 = sphi 0, %s70
    %s72 = sphi 0, %s70
    %s73 = sphi 0, %s72
    %s87 = sphi 0, %s73
    %s91 = sphi 0, %s91
    %s93 = sphi 0, %s91
    %s94 = sphi 0, %s93
    %s108 = sphi 0, %s94
    %s112 = sphi 0, %s112
    %s114 = sphi 0, %s112
    %s115 = sphi 0, %s114
    %s129 = sphi 0, %s115
    %s133 = sphi 0, %s133
    %s135 = sphi 0, %s133
    %s136 = sphi 0, %s135
    %s150 = sphi 0, %s136
    %s154 = sphi 0, %s154
    %s156 = sphi 0, %s154
    %s157 = sphi 0, %s156
    %s171 = sphi 0, %s157
    %s175 = sphi 0, %s175
    %s177 = sphi 0, %s175
    %s178 = sphi 0, %s177
    %s192 = sphi 0, %s178
    %s198 = sphi 0, %s200
    %s201 = sphi 0, %s198
    %s202 = sphi 0, %s201
    %s218 = sphi 0, %s202
  $region4: #{deep_ritz_forward.1} parent=0 // loop_header_branch
    %18 = sbr.rel (%p16) target = $region8
  $region5: #{deep_ritz_forward.1} parent=0 // loop_body
    %s20 = ssub.s32 %s15, 1
    %s21 = ssub.s32 %s15, 2
    %s22 = sadd.s32 %s15, 1
    %s23 = ssub.s32 %s15, %s22
    %p24 = scmp.eq.s32.totalorder %s23, 0
    %s26 = sadd.s32 %s25, 1
    %s27 = scalar_select %p24, %s25, %s26
    %p30 = pneg %p24
    %p31 = scmp.eq.s32.totalorder %s15, 3
    %p32 = por %p30, %p31
    %p33 = scmp.ne.s32.totalorder %s25, %s28
    %p34 = scmp.eq.s32.totalorder %s15, 0
    %p35 = por %p33, %p34
    %p36 = scmp.ne.s32.totalorder %s25, %s28
    %p37 = scmp.eq.s32.totalorder %s20, 3
    %p38 = por %p36, %p37
    %p39 = scmp.ne.s32.totalorder %s28, %s29
    %p40 = scmp.eq.s32.totalorder %s20, 0
    %p41 = por %p39, %p40
    %p42 = scmp.ne.s32.totalorder %s28, %s29
    %p43 = scmp.eq.s32.totalorder %s21, 3
    %p44 = por %p42, %p43
    %p46 = scmp.ne.s32.totalorder %s29, %s45
    %p47 = scmp.eq.s32.totalorder %s21, 0
    %p48 = por %p46, %p47
    %s50 = sadd.s32 %s49, 1
    %p53 = scmp.eq.s32.totalorder %s15, 3
    %p54 = scmp.ne.s32.totalorder %s49, %s51
    %p55 = scmp.eq.s32.totalorder %s15, 0
    %p56 = por %p54, %p55
    %p57 = scmp.ne.s32.totalorder %s49, %s51
    %p58 = scmp.eq.s32.totalorder %s20, 3
    %p59 = por %p57, %p58
    %p60 = scmp.ne.s32.totalorder %s51, %s52
    %p61 = scmp.eq.s32.totalorder %s20, 0
    %p62 = por %p60, %p61
    %p63 = scmp.ne.s32.totalorder %s51, %s52
    %p64 = scmp.eq.s32.totalorder %s21, 3
    %p65 = por %p63, %p64
    %p67 = scmp.ne.s32.totalorder %s52, %s66
    %p68 = scmp.eq.s32.totalorder %s21, 0
    %p69 = por %p67, %p68
    %s71 = sadd.s32 %s70, 1
    %p74 = scmp.eq.s32.totalorder %s15, 3
    %p75 = scmp.ne.s32.totalorder %s70, %s72
    %p76 = scmp.eq.s32.totalorder %s15, 0
    %p77 = por %p75, %p76
    %p78 = scmp.ne.s32.totalorder %s70, %s72
    %p79 = scmp.eq.s32.totalorder %s20, 3
    %p80 = por %p78, %p79
    %p81 = scmp.ne.s32.totalorder %s72, %s73
    %p82 = scmp.eq.s32.totalorder %s20, 0
    %p83 = por %p81, %p82
    %p84 = scmp.ne.s32.totalorder %s72, %s73
    %p85 = scmp.eq.s32.totalorder %s21, 3
    %p86 = por %p84, %p85
    %p88 = scmp.ne.s32.totalorder %s73, %s87
    %p89 = scmp.eq.s32.totalorder %s21, 0
    %p90 = por %p88, %p89
    %s92 = sadd.s32 %s91, 1
    %p95 = scmp.eq.s32.totalorder %s15, 3
    %p96 = scmp.ne.s32.totalorder %s91, %s93
    %p97 = scmp.eq.s32.totalorder %s15, 0
    %p98 = por %p96, %p97
    %p99 = scmp.ne.s32.totalorder %s91, %s93
    %p100 = scmp.eq.s32.totalorder %s20, 3
    %p101 = por %p99, %p100
    %p102 = scmp.ne.s32.totalorder %s93, %s94
    %p103 = scmp.eq.s32.totalorder %s20, 0
    %p104 = por %p102, %p103
    %p105 = scmp.ne.s32.totalorder %s93, %s94
    %p106 = scmp.eq.s32.totalorder %s21, 3
    %p107 = por %p105, %p106
    %p109 = scmp.ne.s32.totalorder %s94, %s108
    %p110 = scmp.eq.s32.totalorder %s21, 0
    %p111 = por %p109, %p110
    %s113 = sadd.s32 %s112, 1
    %p116 = scmp.eq.s32.totalorder %s15, 3
    %p117 = scmp.ne.s32.totalorder %s112, %s114
    %p118 = scmp.eq.s32.totalorder %s15, 0
    %p119 = por %p117, %p118
    %p120 = scmp.ne.s32.totalorder %s112, %s114
    %p121 = scmp.eq.s32.totalorder %s20, 3
    %p122 = por %p120, %p121
    %p123 = scmp.ne.s32.totalorder %s114, %s115
    %p124 = scmp.eq.s32.totalorder %s20, 0
    %p125 = por %p123, %p124
    %p126 = scmp.ne.s32.totalorder %s114, %s115
    %p127 = scmp.eq.s32.totalorder %s21, 3
    %p128 = por %p126, %p127
    %p130 = scmp.ne.s32.totalorder %s115, %s129
    %p131 = scmp.eq.s32.totalorder %s21, 0
    %p132 = por %p130, %p131
    %s134 = sadd.s32 %s133, 1
    %p137 = scmp.eq.s32.totalorder %s15, 3
    %p138 = scmp.ne.s32.totalorder %s133, %s135
    %p139 = scmp.eq.s32.totalorder %s15, 0
    %p140 = por %p138, %p139
    %p141 = scmp.ne.s32.totalorder %s133, %s135
    %p142 = scmp.eq.s32.totalorder %s20, 3
    %p143 = por %p141, %p142
    %p144 = scmp.ne.s32.totalorder %s135, %s136
    %p145 = scmp.eq.s32.totalorder %s20, 0
    %p146 = por %p144, %p145
    %p147 = scmp.ne.s32.totalorder %s135, %s136
    %p148 = scmp.eq.s32.totalorder %s21, 3
    %p149 = por %p147, %p148
    %p151 = scmp.ne.s32.totalorder %s136, %s150
    %p152 = scmp.eq.s32.totalorder %s21, 0
    %p153 = por %p151, %p152
    %s155 = sadd.s32 %s154, 1
    %p158 = scmp.eq.s32.totalorder %s15, 3
    %p159 = scmp.ne.s32.totalorder %s154, %s156
    %p160 = scmp.eq.s32.totalorder %s15, 0
    %p161 = por %p159, %p160
    %p162 = scmp.ne.s32.totalorder %s154, %s156
    %p163 = scmp.eq.s32.totalorder %s20, 3
    %p164 = por %p162, %p163
    %p165 = scmp.ne.s32.totalorder %s156, %s157
    %p166 = scmp.eq.s32.totalorder %s20, 0
    %p167 = por %p165, %p166
    %p168 = scmp.ne.s32.totalorder %s156, %s157
    %p169 = scmp.eq.s32.totalorder %s21, 3
    %p170 = por %p168, %p169
    %p172 = scmp.ne.s32.totalorder %s157, %s171
    %p173 = scmp.eq.s32.totalorder %s21, 0
    %p174 = por %p172, %p173
    %s176 = sadd.s32 %s175, 1
    %p179 = scmp.eq.s32.totalorder %s15, 3
    %p180 = scmp.ne.s32.totalorder %s175, %s177
    %p181 = scmp.eq.s32.totalorder %s15, 0
    %p182 = por %p180, %p181
    %p183 = scmp.ne.s32.totalorder %s175, %s177
    %p184 = scmp.eq.s32.totalorder %s20, 3
    %p185 = por %p183, %p184
    %p186 = scmp.ne.s32.totalorder %s177, %s178
    %p187 = scmp.eq.s32.totalorder %s20, 0
    %p188 = por %p186, %p187
    %p189 = scmp.ne.s32.totalorder %s177, %s178
    %p190 = scmp.eq.s32.totalorder %s21, 3
    %p191 = por %p189, %p190
    %p193 = scmp.ne.s32.totalorder %s178, %s192
    %p194 = scmp.eq.s32.totalorder %s21, 0
    %p195 = por %p193, %p194
    %s196 = ssub.s32 %s15, %s22
    %p197 = scmp.eq.s32.totalorder %s196, 0
    %s199 = sadd.s32 %s198, 1
    %s200 = scalar_select %p197, %s198, %s199
    %p203 = pneg %p197
    %p204 = scmp.eq.s32.totalorder %s15, 3
    %p205 = por %p203, %p204
    %p206 = scmp.ne.s32.totalorder %s198, %s201
    %p207 = scmp.eq.s32.totalorder %s15, 0
    %p208 = por %p206, %p207
    %p209 = scmp.ne.s32.totalorder %s198, %s201
    %p210 = scmp.eq.s32.totalorder %s20, 3
    %p211 = por %p209, %p210
    %p212 = scmp.ne.s32.totalorder %s201, %s202
    %p213 = scmp.eq.s32.totalorder %s20, 0
    %p214 = por %p212, %p213
    %p215 = scmp.ne.s32.totalorder %s201, %s202
    %p216 = scmp.eq.s32.totalorder %s21, 3
    %p217 = por %p215, %p216
    %p219 = scmp.ne.s32.totalorder %s202, %s218
    %p220 = scmp.eq.s32.totalorder %s21, 0
    %p221 = por %p219, %p220
    %p222 = scmp.le.s32.totalorder 1, %s15
    %p223 = scmp.lt.s32.totalorder %s15, 5
    %p224 = pnand %p222, %p223
    %p225 = pneg %p224
    // Predicated region
    $region9: #{deep_ritz_forward.1} parent=5 // pred_check
      _
    $region10: #{deep_ritz_forward.1} parent=5 // pred_check_branch
      %227 = sbr.rel (%p224) target = $region12
    $region11: #{deep_ritz_forward.1} parent=5 // pred_region
      %s228 = ssub.s32 %s15, 1
      // Predicated region
      $region13: #{deep_ritz_forward.1} parent=11 // pred_check
        %p229 = pneg %p62
      $region14: #{deep_ritz_forward.1} parent=11 // pred_check_branch
        %231 = sbr.rel (%p229) target = $region16
      $region15: #{deep_ritz_forward.1} parent=11 // pred_region
        _
      $region16: #{deep_ritz_forward.1} parent=11 // pred_fallthru
        _
      // Predicated region
      $region17: #{deep_ritz_forward.1} parent=11 // pred_check
        %p232 = pneg %p83
      $region18: #{deep_ritz_forward.1} parent=11 // pred_check_branch
        %234 = sbr.rel (%p232) target = $region20
      $region19: #{deep_ritz_forward.1} parent=11 // pred_region
        _
      $region20: #{deep_ritz_forward.1} parent=11 // pred_fallthru
        _
      // Predicated region
      $region21: #{deep_ritz_forward.1} parent=11 // pred_check
        %p235 = pneg %p104
      $region22: #{deep_ritz_forward.1} parent=11 // pred_check_branch
        %237 = sbr.rel (%p235) target = $region24
      $region23: #{deep_ritz_forward.1} parent=11 // pred_region
        _
      $region24: #{deep_ritz_forward.1} parent=11 // pred_fallthru
        _
      // Predicated region
      $region25: #{deep_ritz_forward.1} parent=11 // pred_check
        %p238 = pneg %p125
      $region26: #{deep_ritz_forward.1} parent=11 // pred_check_branch
        %240 = sbr.rel (%p238) target = $region28
      $region27: #{deep_ritz_forward.1} parent=11 // pred_region
        _
      $region28: #{deep_ritz_forward.1} parent=11 // pred_fallthru
        _
      // Predicated region
      $region29: #{deep_ritz_forward.1} parent=11 // pred_check
        %p241 = pneg %p146
      $region30: #{deep_ritz_forward.1} parent=11 // pred_check_branch
        %243 = sbr.rel (%p241) target = $region32
      $region31: #{deep_ritz_forward.1} parent=11 // pred_region
        _
      $region32: #{deep_ritz_forward.1} parent=11 // pred_fallthru
        _
      // Predicated region
      $region33: #{deep_ritz_forward.1} parent=11 // pred_check
        %p244 = pneg %p167
      $region34: #{deep_ritz_forward.1} parent=11 // pred_check_branch
        %246 = sbr.rel (%p244) target = $region36
      $region35: #{deep_ritz_forward.1} parent=11 // pred_region
        _
      $region36: #{deep_ritz_forward.1} parent=11 // pred_fallthru
        _
      // Predicated region
      $region37: #{deep_ritz_forward.1} parent=11 // pred_check
        %p247 = pneg %p188
      $region38: #{deep_ritz_forward.1} parent=11 // pred_check_branch
        %249 = sbr.rel (%p247) target = $region40
      $region39: #{deep_ritz_forward.1} parent=11 // pred_region
        _
      $region40: #{deep_ritz_forward.1} parent=11 // pred_fallthru
        _
    $region12: #{deep_ritz_forward.1} parent=5 // pred_fallthru
      _
    %p250 = scmp.lt.s32.totalorder %s15, 4
    // Predicated region
    $region41: #{deep_ritz_forward.1} parent=5 // pred_check
      %p251 = pneg %p250
    $region42: #{deep_ritz_forward.1} parent=5 // pred_check_branch
      %253 = sbr.rel (%p251) target = $region44
    $region43: #{deep_ritz_forward.1} parent=5 // pred_region
      // Predicated region
      $region45: #{deep_ritz_forward.1} parent=43 // pred_check
        %p254 = pneg %p35
      $region46: #{deep_ritz_forward.1} parent=43 // pred_check_branch
        %256 = sbr.rel (%p254) target = $region48
      $region47: #{deep_ritz_forward.1} parent=43 // pred_region
        %s257 = smul.u32 16, %s15
        %p258 = scmp.lt.s32.totalorder %s257, 63
        %s259 = scalar_select %p258, %s257, 63
        %s260 = smul.addr %s259, 8
        %s261 = scalar_lea.vmem %s0, %s260
        %s262 = smul.u32 16, %s15
      $region48: #{deep_ritz_forward.1} parent=43 // pred_fallthru
        _
    $region44: #{deep_ritz_forward.1} parent=5 // pred_fallthru
      _
    %p263 = scmp.le.s32.totalorder 1, %s15
    %p264 = scmp.lt.s32.totalorder %s15, 5
    %p265 = pnand %p263, %p264
    %p266 = pneg %p265
    // Predicated region
    $region49: #{deep_ritz_forward.1} parent=5 // pred_check
      _
    $region50: #{deep_ritz_forward.1} parent=5 // pred_check_branch
      %268 = sbr.rel (%p265) target = $region52
    $region51: #{deep_ritz_forward.1} parent=5 // pred_region
      %s269 = ssub.s32 %s15, 1
      %s270 = smul.u32 16, %s20
      %p271 = scmp.lt.s32.totalorder %s270, 63
      %s272 = scalar_select %p271, %s270, 63
      %s273 = smul.addr %s272, 8
      %s274 = scalar_lea.vmem %s0, %s273
      %p275 = pneg %p41
      %p276 = pneg %p38
      %p277 = pneg %p62
      %p278 = pneg %p59
      %p279 = pneg %p83
      %p280 = pneg %p80
      %p281 = pneg %p104
      %p282 = pneg %p101
      %p283 = pneg %p125
      %p284 = pneg %p122
      %p285 = pneg %p146
      %p286 = pneg %p143
      %p287 = pneg %p167
      %p288 = pneg %p164
      %p289 = pneg %p188
      %p290 = pneg %p185
      %p291 = pneg %p214
      %p292 = pneg %p211
      %s293 = smul.u32 16, %s20
      %p294 = scmp.lt.s32.totalorder %s293, 63
      %s295 = scalar_select %p294, %s293, 63
      %s296 = smul.addr %s295, 8
      %s297 = scalar_lea.vmem %s8, %s296
      %s298 = smul.u32 16, %s20
      %p299 = scmp.lt.s32.totalorder %s298, 63
      %s300 = scalar_select %p299, %s298, 63
      %s301 = smul.addr %s300, 8
      %s302 = scalar_lea.vmem %s0, %s301
      %s303 = smul.u32 16, %s20
      %s304 = smul.u32 16, %s20
      %p305 = scmp.lt.s32.totalorder %s304, 63
      %s306 = scalar_select %p305, %s304, 63
      %s307 = smul.addr %s306, 8
      %s308 = scalar_lea.vmem %s8, %s307
      %s309 = smul.u32 16, %s20
      %v310 = vld [vmem:[%s302] sm:$0xff]
      %v311 = vld [vmem:[%s302 + $0x8] sm:$0xff]
      %v312 = vld [vmem:[%s302 + $0x10] sm:$0xff]
      %v313 = vld [vmem:[%s302 + $0x18] sm:$0xff]
      %v314 = vld [vmem:[%s302 + $0x20] sm:$0xff]
      %v315 = vld [vmem:[%s302 + $0x28] sm:$0xff]
      %v316 = vld [vmem:[%s302 + $0x30] sm:$0xff]
      %v317 = vld [vmem:[%s302 + $0x38] sm:$0xff]
      %v318 = vld [vmem:[%s302 + $0x40] sm:$0xff]
      %v319 = vld [vmem:[%s302 + $0x48] sm:$0xff]
      %v320 = vld [vmem:[%s302 + $0x50] sm:$0xff]
      %v321 = vld [vmem:[%s302 + $0x58] sm:$0xff]
      %v322 = vld [vmem:[%s302 + $0x60] sm:$0xff]
      %v323 = vld [vmem:[%s302 + $0x68] sm:$0xff]
      %v324 = vld [vmem:[%s302 + $0x70] sm:$0xff]
      %v325 = vld [vmem:[%s302 + $0x78] sm:$0xff]
      %v326 = vld [vmem:[%s1] sm:$0xff]
      %v327 = vld [vmem:[%s1 + $0x8] sm:$0x3]
      %v328 = vld [vmem:[%s2] sm:$0x1]
      %v330 = vlaneseq
      %v331 = vshrl.u32 %v330, 7
      %v332 = vsub.s32 0, %v331
      %v333 = vrot.slane %v328, %v332
      %vm335 = vcmask 80896
      %v337 = vsel %vm335, %v310, 0
      %v340 = vsel %vm335, %v311, 0
      %v343 = vsel %vm335, %v312, 0
      %v346 = vsel %vm335, %v313, 0
      %v349 = vsel %vm335, %v314, 0
      %v352 = vsel %vm335, %v315, 0
      %v355 = vsel %vm335, %v316, 0
      %v358 = vsel %vm335, %v317, 0
      %v361 = vsel %vm335, %v318, 0
      %v364 = vsel %vm335, %v319, 0
      %v367 = vsel %vm335, %v320, 0
      %v370 = vsel %vm335, %v321, 0
      %v373 = vsel %vm335, %v322, 0
      %v376 = vsel %vm335, %v323, 0
      %v379 = vsel %vm335, %v324, 0
      %v382 = vsel %vm335, %v325, 0
      %vm384 = vcmask 1041408
      %v386 = vsel %vm384, %v327, 0
      %388 = vmatprep.subr.mxu0 0.0
      %389 = vmatpush1.msra.mxu0 %v326
      %390 = vmatprep.subr.mxu0 0.0
      %391 = vmatpush1.msra.mxu0 %v386
      %392 = vmatprep.subr.mxu0 0.0
      %393 = vmatpush1.msra.mxu0 0.0
      %394 = vmatprep.subr.mxu0 0.0
      %395 = vmatpush1.msra.mxu0 0.0
      %396 = vmatprep.subr.mxu0 0.0
      %397 = vmatpush1.msra.mxu0 0.0
      %398 = vmatprep.subr.mxu0 0.0
      %399 = vmatpush1.msra.mxu0 0.0
      %400 = vmatprep.subr.mxu0 0.0
      %401 = vmatpush1.msra.mxu0 0.0
      %402 = vmatprep.subr.mxu0 0.0
      %403 = vmatpush1.msra.mxu0 0.0
      %404 = vmatprep.subr.mxu0 0.0
      %405 = vmatpush1.msra.mxu0 0.0
      %406 = vmatprep.subr.mxu0 0.0
      %407 = vmatpush1.msra.mxu0 0.0
      %408 = vmatprep.subr.mxu0 0.0
      %409 = vmatpush1.msra.mxu0 0.0
      %410 = vmatprep.subr.mxu0 0.0
      %411 = vmatpush1.msra.mxu0 0.0
      %412 = vmatprep.subr.mxu0 0.0
      %413 = vmatpush1.msra.mxu0 0.0
      %414 = vmatprep.subr.mxu0 0.0
      %415 = vmatpush1.msra.mxu0 0.0
      %416 = vmatprep.subr.mxu0 0.0
      %417 = vmatpush1.msra.mxu0 0.0
      %418 = vmatprep.subr.mxu0 0.0
      %419 = vmatpush1.msra.mxu0 0.0
      %420 = vmatprep.subr.mxu0 0.0
      %421 = vmatpush1.msra.mxu0 0.0
      %422 = vmatprep.subr.mxu0 0.0
      %423 = vmatpush1.msra.mxu0 0.0
      %424 = vmatprep.subr.mxu0 0.0
      %425 = vmatpush1.msra.mxu0 0.0
      %426 = vmatprep.subr.mxu0 0.0
      %427 = vmatpush1.msra.mxu0 0.0
      %428 = vmatprep.subr.mxu0 0.0
      %429 = vmatpush1.msra.mxu0 0.0
      %430 = vmatprep.subr.mxu0 0.0
      %431 = vmatpush1.msra.mxu0 0.0
      %432 = vmatprep.subr.mxu0 0.0
      %433 = vmatpush1.msra.mxu0 0.0
      %434 = vmatprep.subr.mxu0 0.0
      %435 = vmatpush1.msra.mxu0 0.0
      %436 = vmatprep.subr.mxu0 0.0
      %437 = vmatpush1.msra.mxu0 0.0
      %438 = vmatprep.subr.mxu0 0.0
      %439 = vmatpush1.msra.mxu0 0.0
      %440 = vmatprep.subr.mxu0 0.0
      %441 = vmatpush1.msra.mxu0 0.0
      %442 = vmatprep.subr.mxu0 0.0
      %443 = vmatpush1.msra.mxu0 0.0
      %444 = vmatprep.subr.mxu0 0.0
      %445 = vmatpush1.msra.mxu0 0.0
      %446 = vmatprep.subr.mxu0 0.0
      %447 = vmatpush1.msra.mxu0 0.0
      %448 = vmatprep.subr.mxu0 0.0
      %449 = vmatpush1.msra.mxu0 0.0
      %450 = vmatprep.subr.mxu0 0.0
      %451 = vmatpush1.msra.mxu0 0.0
      %452 = vmatprep.mubr.f32.mxu0 0.0
      %453 = vmatmul.mubr.f32.gmra.mrb[0].mxu0 %v337
      %v454 = vpop.f32.mrb[0].mxu0
      %v455 = vadd.f32 %v333, %v454
      %v456 = vpop.f32.mrb[0].mxu0
      %457 = vmatprep.mubr.f32.mxu0 0.0
      %458 = vmatmul.mubr.f32.gmra.mrb[0].mxu0 %v340
      %v459 = vpop.f32.mrb[0].mxu0
      %v460 = vadd.f32 %v333, %v459
      %v461 = vpop.f32.mrb[0].mxu0
      %462 = vmatprep.mubr.f32.mxu0 0.0
      %463 = vmatmul.mubr.f32.gmra.mrb[0].mxu0 %v343
      %v464 = vpop.f32.mrb[0].mxu0
      %v465 = vadd.f32 %v333, %v464
      %v466 = vpop.f32.mrb[0].mxu0
      %467 = vmatprep.mubr.f32.mxu0 0.0
      %468 = vmatmul.mubr.f32.gmra.mrb[0].mxu0 %v346
      %v469 = vpop.f32.mrb[0].mxu0
      %v470 = vadd.f32 %v333, %v469
      %v471 = vpop.f32.mrb[0].mxu0
      %472 = vmatprep.mubr.f32.mxu0 0.0
      %473 = vmatmul.mubr.f32.gmra.mrb[0].mxu0 %v349
      %v474 = vpop.f32.mrb[0].mxu0
      %v475 = vadd.f32 %v333, %v474
      %v476 = vpop.f32.mrb[0].mxu0
      %477 = vmatprep.mubr.f32.mxu0 0.0
      %478 = vmatmul.mubr.f32.gmra.mrb[0].mxu0 %v352
      %v479 = vpop.f32.mrb[0].mxu0
      %v480 = vadd.f32 %v333, %v479
      %v481 = vpop.f32.mrb[0].mxu0
      %482 = vmatprep.mubr.f32.mxu0 0.0
      %483 = vmatmul.mubr.f32.gmra.mrb[0].mxu0 %v355
      %v484 = vpop.f32.mrb[0].mxu0
      %v485 = vadd.f32 %v333, %v484
      %v486 = vpop.f32.mrb[0].mxu0
      %487 = vmatprep.mubr.f32.mxu0 0.0
      %488 = vmatmul.mubr.f32.gmra.mrb[0].mxu0 %v358
      %v489 = vpop.f32.mrb[0].mxu0
      %v490 = vadd.f32 %v333, %v489
      %v491 = vpop.f32.mrb[0].mxu0
      %492 = vmatprep.mubr.f32.mxu0 0.0
      %493 = vmatmul.mubr.f32.gmra.mrb[0].mxu0 %v361
      %v494 = vpop.f32.mrb[0].mxu0
      %v495 = vadd.f32 %v333, %v494
      %v496 = vpop.f32.mrb[0].mxu0
      %497 = vmatprep.mubr.f32.mxu0 0.0
      %498 = vmatmul.mubr.f32.gmra.mrb[0].mxu0 %v364
      %v499 = vpop.f32.mrb[0].mxu0
      %v500 = vadd.f32 %v333, %v499
      %v501 = vpop.f32.mrb[0].mxu0
      %502 = vmatprep.mubr.f32.mxu0 0.0
      %503 = vmatmul.mubr.f32.gmra.mrb[0].mxu0 %v367
      %v504 = vpop.f32.mrb[0].mxu0
      %v505 = vadd.f32 %v333, %v504
      %v506 = vpop.f32.mrb[0].mxu0
      %507 = vmatprep.mubr.f32.mxu0 0.0
      %508 = vmatmul.mubr.f32.gmra.mrb[0].mxu0 %v370
      %v509 = vpop.f32.mrb[0].mxu0
      %v510 = vadd.f32 %v333, %v509
      %v511 = vpop.f32.mrb[0].mxu0
      %512 = vmatprep.mubr.f32.mxu0 0.0
      %513 = vmatmul.mubr.f32.gmra.mrb[0].mxu0 %v373
      %v514 = vpop.f32.mrb[0].mxu0
      %v515 = vadd.f32 %v333, %v514
      %v516 = vpop.f32.mrb[0].mxu0
      %517 = vmatprep.mubr.f32.mxu0 0.0
      %518 = vmatmul.mubr.f32.gmra.mrb[0].mxu0 %v376
      %v519 = vpop.f32.mrb[0].mxu0
      %v520 = vadd.f32 %v333, %v519
      %v521 = vpop.f32.mrb[0].mxu0
      %522 = vmatprep.mubr.f32.mxu0 0.0
      %523 = vmatmul.mubr.f32.gmra.mrb[0].mxu0 %v379
      %v524 = vpop.f32.mrb[0].mxu0
      %v525 = vadd.f32 %v333, %v524
      %v526 = vpop.f32.mrb[0].mxu0
      %527 = vmatprep.mubr.f32.mxu0 0.0
      %528 = vmatmul.mubr.f32.gmra.mrb[0].mxu0 %v382
      %v529 = vpop.f32.mrb[0].mxu0
      %v530 = vadd.f32 %v333, %v529
      %v531 = vpop.f32.mrb[0].mxu0
      %532 = vdwg.mxu0
      %v533 = vmax.f32 %v455, 0.0
      %v534 = vmax.f32 %v460, 0.0
      %v535 = vmax.f32 %v465, 0.0
      %v536 = vmax.f32 %v470, 0.0
      %v537 = vmax.f32 %v475, 0.0
      %v538 = vmax.f32 %v480, 0.0
      %v539 = vmax.f32 %v485, 0.0
      %v540 = vmax.f32 %v490, 0.0
      %v541 = vmax.f32 %v495, 0.0
      %v542 = vmax.f32 %v500, 0.0
      %v543 = vmax.f32 %v505, 0.0
      %v544 = vmax.f32 %v510, 0.0
      %v545 = vmax.f32 %v515, 0.0
      %v546 = vmax.f32 %v520, 0.0
      %v547 = vmax.f32 %v525, 0.0
      %v548 = vmax.f32 %v530, 0.0
      %v549 = vld [vmem:[%s3] sm:$0xff]
      %v550 = vld [vmem:[%s3 + $0x8] sm:$0xff]
      %v551 = vld [vmem:[%s3 + $0x10] sm:$0xff]
      %v552 = vld [vmem:[%s3 + $0x18] sm:$0xff]
      %v553 = vld [vmem:[%s3 + $0x20] sm:$0xff]
      %v554 = vld [vmem:[%s3 + $0x28] sm:$0xff]
      %v555 = vld [vmem:[%s3 + $0x30] sm:$0xff]
      %v556 = vld [vmem:[%s3 + $0x38] sm:$0xff]
      %v557 = vld [vmem:[%s3 + $0x40] sm:$0xff]
      %v558 = vld [vmem:[%s3 + $0x48] sm:$0xff]
      %v559 = vld [vmem:[%s3 + $0x50] sm:$0xff]
      %v560 = vld [vmem:[%s3 + $0x58] sm:$0xff]
      %v561 = vld [vmem:[%s3 + $0x60] sm:$0xff]
      %v562 = vld [vmem:[%s3 + $0x68] sm:$0xff]
      %v563 = vld [vmem:[%s3 + $0x70] sm:$0xff]
      %v564 = vld [vmem:[%s3 + $0x78] sm:$0xff]
      %v565 = vld [vmem:[%s4] sm:$0x1]
      %v567 = vlaneseq
      %v568 = vshrl.u32 %v567, 7
      %v569 = vsub.s32 0, %v568
      %v570 = vrot.slane %v565, %v569
      %572 = vmatprep.subr.mxu0 0.0
      %573 = vmatpush1.msra.mxu0 %v549
      %574 = vmatprep.subr.mxu0 0.0
      %575 = vmatpush1.msra.mxu0 %v550
      %576 = vmatprep.subr.mxu0 0.0
      %577 = vmatpush1.msra.mxu0 %v551
      %578 = vmatprep.subr.mxu0 0.0
      %579 = vmatpush1.msra.mxu0 %v552
      %580 = vmatprep.subr.mxu0 0.0
      %581 = vmatpush1.msra.mxu0 %v553
      %582 = vmatprep.subr.mxu0 0.0
      %583 = vmatpush1.msra.mxu0 %v554
      %584 = vmatprep.subr.mxu0 0.0
      %585 = vmatpush1.msra.mxu0 %v555
      %586 = vmatprep.subr.mxu0 0.0
      %587 = vmatpush1.msra.mxu0 %v556
      %588 = vmatprep.subr.mxu0 0.0
      %589 = vmatpush1.msra.mxu0 %v557
      %590 = vmatprep.subr.mxu0 0.0
      %591 = vmatpush1.msra.mxu0 %v558
      %592 = vmatprep.subr.mxu0 0.0
      %593 = vmatpush1.msra.mxu0 %v559
      %594 = vmatprep.subr.mxu0 0.0
      %595 = vmatpush1.msra.mxu0 %v560
      %596 = vmatprep.subr.mxu0 0.0
      %597 = vmatpush1.msra.mxu0 %v561
      %598 = vmatprep.subr.mxu0 0.0
      %599 = vmatpush1.msra.mxu0 %v562
      %600 = vmatprep.subr.mxu0 0.0
      %601 = vmatpush1.msra.mxu0 %v563
      %602 = vmatprep.subr.mxu0 0.0
      %603 = vmatpush1.msra.mxu0 %v564
      %604 = vmatprep.subr.mxu0 0.0
      %605 = vmatpush1.msra.mxu0 0.0
      %606 = vmatprep.subr.mxu0 0.0
      %607 = vmatpush1.msra.mxu0 0.0
      %608 = vmatprep.subr.mxu0 0.0
      %609 = vmatpush1.msra.mxu0 0.0
      %610 = vmatprep.subr.mxu0 0.0
      %611 = vmatpush1.msra.mxu0 0.0
      %612 = vmatprep.subr.mxu0 0.0
      %613 = vmatpush1.msra.mxu0 0.0
      %614 = vmatprep.subr.mxu0 0.0
      %615 = vmatpush1.msra.mxu0 0.0
      %616 = vmatprep.subr.mxu0 0.0
      %617 = vmatpush1.msra.mxu0 0.0
      %618 = vmatprep.subr.mxu0 0.0
      %619 = vmatpush1.msra.mxu0 0.0
      %620 = vmatprep.subr.mxu0 0.0
      %621 = vmatpush1.msra.mxu0 0.0
      %622 = vmatprep.subr.mxu0 0.0
      %623 = vmatpush1.msra.mxu0 0.0
      %624 = vmatprep.subr.mxu0 0.0
      %625 = vmatpush1.msra.mxu0 0.0
      %626 = vmatprep.subr.mxu0 0.0
      %627 = vmatpush1.msra.mxu0 0.0
      %628 = vmatprep.subr.mxu0 0.0
      %629 = vmatpush1.msra.mxu0 0.0
      %630 = vmatprep.subr.mxu0 0.0
      %631 = vmatpush1.msra.mxu0 0.0
      %632 = vmatprep.subr.mxu0 0.0
      %633 = vmatpush1.msra.mxu0 0.0
      %634 = vmatprep.subr.mxu0 0.0
      %635 = vmatpush1.msra.mxu0 0.0
      %636 = vmatprep.mubr.f32.mxu0 0.0
      %637 = vmatmul.mubr.f32.gmra.mrb[0].mxu0 %v533
      %v638 = vpop.f32.mrb[0].mxu0
      %v639 = vadd.f32 %v570, %v638
      %v640 = vpop.f32.mrb[0].mxu0
      %641 = vmatprep.mubr.f32.mxu0 0.0
      %642 = vmatmul.mubr.f32.gmra.mrb[0].mxu0 %v534
      %v643 = vpop.f32.mrb[0].mxu0
      %v644 = vadd.f32 %v570, %v643
      %v645 = vpop.f32.mrb[0].mxu0
      %646 = vmatprep.mubr.f32.mxu0 0.0
      %647 = vmatmul.mubr.f32.gmra.mrb[0].mxu0 %v535
      %v648 = vpop.f32.mrb[0].mxu0
      %v649 = vadd.f32 %v570, %v648
      %v650 = vpop.f32.mrb[0].mxu0
      %651 = vmatprep.mubr.f32.mxu0 0.0
      %652 = vmatmul.mubr.f32.gmra.mrb[0].mxu0 %v536
      %v653 = vpop.f32.mrb[0].mxu0
      %v654 = vadd.f32 %v570, %v653
      %v655 = vpop.f32.mrb[0].mxu0
      %656 = vmatprep.mubr.f32.mxu0 0.0
      %657 = vmatmul.mubr.f32.gmra.mrb[0].mxu0 %v537
      %v658 = vpop.f32.mrb[0].mxu0
      %v659 = vadd.f32 %v570, %v658
      %v660 = vpop.f32.mrb[0].mxu0
      %661 = vmatprep.mubr.f32.mxu0 0.0
      %662 = vmatmul.mubr.f32.gmra.mrb[0].mxu0 %v538
      %v663 = vpop.f32.mrb[0].mxu0
      %v664 = vadd.f32 %v570, %v663
      %v665 = vpop.f32.mrb[0].mxu0
      %666 = vmatprep.mubr.f32.mxu0 0.0
      %667 = vmatmul.mubr.f32.gmra.mrb[0].mxu0 %v539
      %v668 = vpop.f32.mrb[0].mxu0
      %v669 = vadd.f32 %v570, %v668
      %v670 = vpop.f32.mrb[0].mxu0
      %671 = vmatprep.mubr.f32.mxu0 0.0
      %672 = vmatmul.mubr.f32.gmra.mrb[0].mxu0 %v540
      %v673 = vpop.f32.mrb[0].mxu0
      %v674 = vadd.f32 %v570, %v673
      %v675 = vpop.f32.mrb[0].mxu0
      %676 = vmatprep.mubr.f32.mxu0 0.0
      %677 = vmatmul.mubr.f32.gmra.mrb[0].mxu0 %v541
      %v678 = vpop.f32.mrb[0].mxu0
      %v679 = vadd.f32 %v570, %v678
      %v680 = vpop.f32.mrb[0].mxu0
      %681 = vmatprep.mubr.f32.mxu0 0.0
      %682 = vmatmul.mubr.f32.gmra.mrb[0].mxu0 %v542
      %v683 = vpop.f32.mrb[0].mxu0
      %v684 = vadd.f32 %v570, %v683
      %v685 = vpop.f32.mrb[0].mxu0
      %686 = vmatprep.mubr.f32.mxu0 0.0
      %687 = vmatmul.mubr.f32.gmra.mrb[0].mxu0 %v543
      %v688 = vpop.f32.mrb[0].mxu0
      %v689 = vadd.f32 %v570, %v688
      %v690 = vpop.f32.mrb[0].mxu0
      %691 = vmatprep.mubr.f32.mxu0 0.0
      %692 = vmatmul.mubr.f32.gmra.mrb[0].mxu0 %v544
      %v693 = vpop.f32.mrb[0].mxu0
      %v694 = vadd.f32 %v570, %v693
      %v695 = vpop.f32.mrb[0].mxu0
      %696 = vmatprep.mubr.f32.mxu0 0.0
      %697 = vmatmul.mubr.f32.gmra.mrb[0].mxu0 %v545
      %v698 = vpop.f32.mrb[0].mxu0
      %v699 = vadd.f32 %v570, %v698
      %v700 = vpop.f32.mrb[0].mxu0
      %701 = vmatprep.mubr.f32.mxu0 0.0
      %702 = vmatmul.mubr.f32.gmra.mrb[0].mxu0 %v546
      %v703 = vpop.f32.mrb[0].mxu0
      %v704 = vadd.f32 %v570, %v703
      %v705 = vpop.f32.mrb[0].mxu0
      %706 = vmatprep.mubr.f32.mxu0 0.0
      %707 = vmatmul.mubr.f32.gmra.mrb[0].mxu0 %v547
      %v708 = vpop.f32.mrb[0].mxu0
      %v709 = vadd.f32 %v570, %v708
      %v710 = vpop.f32.mrb[0].mxu0
      %711 = vmatprep.mubr.f32.mxu0 0.0
      %712 = vmatmul.mubr.f32.gmra.mrb[0].mxu0 %v548
      %v713 = vpop.f32.mrb[0].mxu0
      %v714 = vadd.f32 %v570, %v713
      %v715 = vpop.f32.mrb[0].mxu0
      %716 = vdwg.mxu0
      %v717 = vmax.f32 %v639, 0.0
      %v718 = vmax.f32 %v644, 0.0
      %v719 = vmax.f32 %v649, 0.0
      %v720 = vmax.f32 %v654, 0.0
      %v721 = vmax.f32 %v659, 0.0
      %v722 = vmax.f32 %v664, 0.0
      %v723 = vmax.f32 %v669, 0.0
      %v724 = vmax.f32 %v674, 0.0
      %v725 = vmax.f32 %v679, 0.0
      %v726 = vmax.f32 %v684, 0.0
      %v727 = vmax.f32 %v689, 0.0
      %v728 = vmax.f32 %v694, 0.0
      %v729 = vmax.f32 %v699, 0.0
      %v730 = vmax.f32 %v704, 0.0
      %v731 = vmax.f32 %v709, 0.0
      %v732 = vmax.f32 %v714, 0.0
      %v733 = vld [vmem:[%s5] sm:$0x1]
      %v735 = vlaneseq
      %v736 = vshrl.u32 %v735, 7
      %v737 = vsub.s32 0, %v736
      %v738 = vrot.slane %v733, %v737
      %v740 = vmul.f32 %v717, %v738
      %v741 = vmul.f32 %v718, %v738
      %v742 = vmul.f32 %v719, %v738
      %v743 = vmul.f32 %v720, %v738
      %v744 = vmul.f32 %v721, %v738
      %v745 = vmul.f32 %v722, %v738
      %v746 = vmul.f32 %v723, %v738
      %v747 = vmul.f32 %v724, %v738
      %v748 = vmul.f32 %v725, %v738
      %v749 = vmul.f32 %v726, %v738
      %v750 = vmul.f32 %v727, %v738
      %v751 = vmul.f32 %v728, %v738
      %v752 = vmul.f32 %v729, %v738
      %v753 = vmul.f32 %v730, %v738
      %v754 = vmul.f32 %v731, %v738
      %v755 = vmul.f32 %v732, %v738
      %756 = vadd.xlane.f32.xlu0 %v740
      %v757 = vpop.xlane.xlu0 %756
      %758 = vadd.xlane.f32.xlu0 %v741
      %v759 = vpop.xlane.xlu0 %758
      %760 = vadd.xlane.f32.xlu0 %v742
      %v761 = vpop.xlane.xlu0 %760
      %762 = vadd.xlane.f32.xlu0 %v743
      %v763 = vpop.xlane.xlu0 %762
      %764 = vadd.xlane.f32.xlu0 %v744
      %v765 = vpop.xlane.xlu0 %764
      %766 = vadd.xlane.f32.xlu0 %v745
      %v767 = vpop.xlane.xlu0 %766
      %768 = vadd.xlane.f32.xlu0 %v746
      %v769 = vpop.xlane.xlu0 %768
      %770 = vadd.xlane.f32.xlu0 %v747
      %v771 = vpop.xlane.xlu0 %770
      %772 = vadd.xlane.f32.xlu0 %v748
      %v773 = vpop.xlane.xlu0 %772
      %774 = vadd.xlane.f32.xlu0 %v749
      %v775 = vpop.xlane.xlu0 %774
      %776 = vadd.xlane.f32.xlu0 %v750
      %v777 = vpop.xlane.xlu0 %776
      %778 = vadd.xlane.f32.xlu0 %v751
      %v779 = vpop.xlane.xlu0 %778
      %780 = vadd.xlane.f32.xlu0 %v752
      %v781 = vpop.xlane.xlu0 %780
      %782 = vadd.xlane.f32.xlu0 %v753
      %v783 = vpop.xlane.xlu0 %782
      %784 = vadd.xlane.f32.xlu0 %v754
      %v785 = vpop.xlane.xlu0 %784
      %786 = vadd.xlane.f32.xlu0 %v755
      %v787 = vpop.xlane.xlu0 %786
      %v788 = vld [vmem:[%s6] sm:$0x1]
      %v790 = vlaneseq
      %v791 = vshrl.u32 %v790, 7
      %v792 = vsub.s32 0, %v791
      %v793 = vrot.slane %v788, %v792
      %v795 = vmul.f32 %v310, %v793
      %v796 = vmul.f32 %v311, %v793
      %v797 = vmul.f32 %v312, %v793
      %v798 = vmul.f32 %v313, %v793
      %v799 = vmul.f32 %v314, %v793
      %v800 = vmul.f32 %v315, %v793
      %v801 = vmul.f32 %v316, %v793
      %v802 = vmul.f32 %v317, %v793
      %v803 = vmul.f32 %v318, %v793
      %v804 = vmul.f32 %v319, %v793
      %v805 = vmul.f32 %v320, %v793
      %v806 = vmul.f32 %v321, %v793
      %v807 = vmul.f32 %v322, %v793
      %v808 = vmul.f32 %v323, %v793
      %v809 = vmul.f32 %v324, %v793
      %v810 = vmul.f32 %v325, %v793
      %v811 = vsel %vm335, %v795, 0.0
      %812 = vadd.xlane.f32.xlu0 %v811
      %v813 = vpop.xlane.xlu0 %812
      %v814 = vsel %vm335, %v796, 0.0
      %815 = vadd.xlane.f32.xlu0 %v814
      %v816 = vpop.xlane.xlu0 %815
      %v817 = vsel %vm335, %v797, 0.0
      %818 = vadd.xlane.f32.xlu0 %v817
      %v819 = vpop.xlane.xlu0 %818
      %v820 = vsel %vm335, %v798, 0.0
      %821 = vadd.xlane.f32.xlu0 %v820
      %v822 = vpop.xlane.xlu0 %821
      %v823 = vsel %vm335, %v799, 0.0
      %824 = vadd.xlane.f32.xlu0 %v823
      %v825 = vpop.xlane.xlu0 %824
      %v826 = vsel %vm335, %v800, 0.0
      %827 = vadd.xlane.f32.xlu0 %v826
      %v828 = vpop.xlane.xlu0 %827
      %v829 = vsel %vm335, %v801, 0.0
      %830 = vadd.xlane.f32.xlu0 %v829
      %v831 = vpop.xlane.xlu0 %830
      %v832 = vsel %vm335, %v802, 0.0
      %833 = vadd.xlane.f32.xlu0 %v832
      %v834 = vpop.xlane.xlu0 %833
      %v835 = vsel %vm335, %v803, 0.0
      %836 = vadd.xlane.f32.xlu0 %v835
      %v837 = vpop.xlane.xlu0 %836
      %v838 = vsel %vm335, %v804, 0.0
      %839 = vadd.xlane.f32.xlu0 %v838
      %v840 = vpop.xlane.xlu0 %839
      %v841 = vsel %vm335, %v805, 0.0
      %842 = vadd.xlane.f32.xlu0 %v841
      %v843 = vpop.xlane.xlu0 %842
      %v844 = vsel %vm335, %v806, 0.0
      %845 = vadd.xlane.f32.xlu0 %v844
      %v846 = vpop.xlane.xlu0 %845
      %v847 = vsel %vm335, %v807, 0.0
      %848 = vadd.xlane.f32.xlu0 %v847
      %v849 = vpop.xlane.xlu0 %848
      %v850 = vsel %vm335, %v808, 0.0
      %851 = vadd.xlane.f32.xlu0 %v850
      %v852 = vpop.xlane.xlu0 %851
      %v853 = vsel %vm335, %v809, 0.0
      %854 = vadd.xlane.f32.xlu0 %v853
      %v855 = vpop.xlane.xlu0 %854
      %v856 = vsel %vm335, %v810, 0.0
      %857 = vadd.xlane.f32.xlu0 %v856
      %v858 = vpop.xlane.xlu0 %857
      %v859 = vadd.f32 %v757, %v813
      %v860 = vadd.f32 %v759, %v816
      %v861 = vadd.f32 %v761, %v819
      %v862 = vadd.f32 %v763, %v822
      %v863 = vadd.f32 %v765, %v825
      %v864 = vadd.f32 %v767, %v828
      %v865 = vadd.f32 %v769, %v831
      %v866 = vadd.f32 %v771, %v834
      %v867 = vadd.f32 %v773, %v837
      %v868 = vadd.f32 %v775, %v840
      %v869 = vadd.f32 %v777, %v843
      %v870 = vadd.f32 %v779, %v846
      %v871 = vadd.f32 %v781, %v849
      %v872 = vadd.f32 %v783, %v852
      %v873 = vadd.f32 %v785, %v855
      %v874 = vadd.f32 %v787, %v858
      %s875 = sld [smem:[#allocation2]]
      %v876 = vstv %s875
      %v877 = vadd.f32 %v859, %v876
      %v878 = vadd.f32 %v860, %v876
      %v879 = vadd.f32 %v861, %v876
      %v880 = vadd.f32 %v862, %v876
      %v881 = vadd.f32 %v863, %v876
      %v882 = vadd.f32 %v864, %v876
      %v883 = vadd.f32 %v865, %v876
      %v884 = vadd.f32 %v866, %v876
      %v885 = vadd.f32 %v867, %v876
      %v886 = vadd.f32 %v868, %v876
      %v887 = vadd.f32 %v869, %v876
      %v888 = vadd.f32 %v870, %v876
      %v889 = vadd.f32 %v871, %v876
      %v890 = vadd.f32 %v872, %v876
      %v891 = vadd.f32 %v873, %v876
      %v892 = vadd.f32 %v874, %v876
      %v893 = vmax.f32 %v877, 0.0
      %v894 = vmax.f32 %v878, 0.0
      %v895 = vmax.f32 %v879, 0.0
      %v896 = vmax.f32 %v880, 0.0
      %v897 = vmax.f32 %v881, 0.0
      %v898 = vmax.f32 %v882, 0.0
      %v899 = vmax.f32 %v883, 0.0
      %v900 = vmax.f32 %v884, 0.0
      %v901 = vmax.f32 %v885, 0.0
      %v902 = vmax.f32 %v886, 0.0
      %v903 = vmax.f32 %v887, 0.0
      %v904 = vmax.f32 %v888, 0.0
      %v905 = vmax.f32 %v889, 0.0
      %v906 = vmax.f32 %v890, 0.0
      %v907 = vmax.f32 %v891, 0.0
      %v908 = vmax.f32 %v892, 0.0
      %vm909 = vcmask 7168
      %910 = vst.msk [vmem:[%s308] sm:$0xff] %vm909, %v893
      %911 = vst.msk [vmem:[%s308 + $0x8] sm:$0xff] %vm909, %v894
      %912 = vst.msk [vmem:[%s308 + $0x10] sm:$0xff] %vm909, %v895
      %913 = vst.msk [vmem:[%s308 + $0x18] sm:$0xff] %vm909, %v896
      %914 = vst.msk [vmem:[%s308 + $0x20] sm:$0xff] %vm909, %v897
      %915 = vst.msk [vmem:[%s308 + $0x28] sm:$0xff] %vm909, %v898
      %916 = vst.msk [vmem:[%s308 + $0x30] sm:$0xff] %vm909, %v899
      %917 = vst.msk [vmem:[%s308 + $0x38] sm:$0xff] %vm909, %v900
      %918 = vst.msk [vmem:[%s308 + $0x40] sm:$0xff] %vm909, %v901
      %919 = vst.msk [vmem:[%s308 + $0x48] sm:$0xff] %vm909, %v902
      %920 = vst.msk [vmem:[%s308 + $0x50] sm:$0xff] %vm909, %v903
      %921 = vst.msk [vmem:[%s308 + $0x58] sm:$0xff] %vm909, %v904
      %922 = vst.msk [vmem:[%s308 + $0x60] sm:$0xff] %vm909, %v905
      %923 = vst.msk [vmem:[%s308 + $0x68] sm:$0xff] %vm909, %v906
      %924 = vst.msk [vmem:[%s308 + $0x70] sm:$0xff] %vm909, %v907
      %925 = vst.msk [vmem:[%s308 + $0x78] sm:$0xff] %vm909, %v908
      %s926 = smul.u32 16, %s20
      %p927 = scmp.lt.s32.totalorder %s926, 63
      %s928 = scalar_select %p927, %s926, 63
      %s929 = smul.addr %s928, 8
      %s930 = scalar_lea.vmem %s8, %s929
      // Predicated region
      $region53: #{deep_ritz_forward.1} parent=51 // pred_check
        %p931 = pneg %p211
      $region54: #{deep_ritz_forward.1} parent=51 // pred_check_branch
        %933 = sbr.rel (%p931) target = $region56
      $region55: #{deep_ritz_forward.1} parent=51 // pred_region
        %s934 = smul.u32 16, %s20
      $region56: #{deep_ritz_forward.1} parent=51 // pred_fallthru
        _
    $region52: #{deep_ritz_forward.1} parent=5 // pred_fallthru
      _
    %p935 = scmp.le.s32.totalorder 2, %s15
    // Predicated region
    $region57: #{deep_ritz_forward.1} parent=5 // pred_check
      %p936 = pneg %p935
    $region58: #{deep_ritz_forward.1} parent=5 // pred_check_branch
      %938 = sbr.rel (%p936) target = $region60
    $region59: #{deep_ritz_forward.1} parent=5 // pred_region
      %s939 = ssub.s32 %s15, 2
      // Predicated region
      $region61: #{deep_ritz_forward.1} parent=59 // pred_check
        %p940 = pneg %p217
      $region62: #{deep_ritz_forward.1} parent=59 // pred_check_branch
        %942 = sbr.rel (%p940) target = $region64
      $region63: #{deep_ritz_forward.1} parent=59 // pred_region
        %s943 = smul.u32 16, %s21
        %p944 = scmp.lt.s32.totalorder %s943, 63
        %s945 = scalar_select %p944, %s943, 63
        %s946 = smul.addr %s945, 8
        %s947 = scalar_lea.vmem %s8, %s946
      $region64: #{deep_ritz_forward.1} parent=59 // pred_fallthru
        _
    $region60: #{deep_ritz_forward.1} parent=5 // pred_fallthru
      _
  $region6: #{deep_ritz_forward.1} parent=0 // loop_footer
    %s19 = sadd.s32 1, %s15
  $region7: #{deep_ritz_forward.1} parent=0 // loop_footer_branch
    %14 = sbr.rel target = $region3
  $region8: #{deep_ritz_forward.1} parent=0 // loop_exit
    _

</llo_original>
